<compile_context>
chip_gen: v7x
topology: tpu7x:2x2x1
jax: 0.10.0
libtpu: 0.0.40
codegen_flags: <defaults>
</compile_context>

<pallas_src>
import functools

import jax
import jax.numpy as jnp
from jax.experimental import pallas as pl
from jax.experimental.pallas import tpu as pltpu

_EPS2 = 1e-8 * 1e-8      # nn.CosineSimilarity default eps, squared
_LANE = 128              # TPU lane width
_CHUNK_ROWS = 256        # in-kernel row-chunk target (256*128 pixels / chunk)


def _round_up(x, m):
    return ((x + m - 1) // m) * m


def _cdiv(a, b):
    return -(-a // b)


def _largest_aligned_divisor(n, cap):
    """Largest multiple of 8 that divides n and is <= cap (n is a multiple of 8)."""
    d = min(n, max(8, (cap // 8) * 8))
    d -= d % 8
    while d > 8 and n % d != 0:
        d -= 8
    return max(d, 8)


def _vmem_config():
    """Returns (per-tile VMEM budget for buffers+accumulators, vmem_limit_bytes)."""
    cap = None
    try:
        cap = int(pltpu.get_tpu_info().vmem_capacity_bytes)
    except Exception:
        try:
            kind = jax.devices()[0].device_kind.lower()
            if "v5" in kind or "v6" in kind:
                cap = 128 * 1024 * 1024
        except Exception:
            pass
    if cap is None:
        cap = 64 * 1024 * 1024                       # assume the small-VMEM gen (v7x)
    if cap >= 100 * 1024 * 1024:                     # v5e / v6e: 128 MiB per core
        return 36 * 1024 * 1024, 64 * 1024 * 1024
    return 18 * 1024 * 1024, 30 * 1024 * 1024        # v7x: 64 MiB physical


def _plan_tiles(nrows_min, max_rows):
    """Pick (rows_per_tile, num_tiles, chunk_rows); total rows = tile*num >= nrows_min."""
    max_rows = max(8, (max_rows // 8) * 8)
    if nrows_min <= max_rows:
        num_tiles = 1
        rows = _round_up(max(nrows_min, 1), 8)
    else:
        num_tiles = _cdiv(nrows_min, max_rows)
        rows = _round_up(_cdiv(nrows_min, num_tiles), 8)
    crows = _largest_aligned_divisor(rows, _CHUNK_ROWS)
    # If the tile only has tiny aligned divisors, pad it up to a chunk multiple,
    # but only when the extra zero-padding traffic stays <= ~12.5%.
    if (crows < 64 and rows > _CHUNK_ROWS
            and _round_up(rows, _CHUNK_ROWS) <= rows + rows // 8):
        rows = _round_up(rows, _CHUNK_ROWS)
        crows = _CHUNK_ROWS
    return rows, num_tiles, crows


def _pixcontrast_kernel(feat_ref, lab_ref, out_u_ref, out_m_ref,
                        acc_u_ref, acc_m_ref, *, chunk_rows):
    """Grid step (b, t): accumulate per-pixel cosine terms of one row-tile.

    feat_ref : VMEM (C, R, 128)    feature tile (native wire dtype)
    lab_ref  : VMEM (1, R, 128)    label tile
    out_*    : VMEM (1, 8, 128) f32  per-batch sums (written at the last tile)
    acc_*    : VMEM (R, 128) f32     partial sums, persist across the tile axis
    """
    t = pl.program_id(1)

    @pl.when(t == 0)
    def _init():
        acc_u_ref[...] = jnp.zeros_like(acc_u_ref)
        acc_m_ref[...] = jnp.zeros_like(acc_m_ref)

    num_ch = feat_ref.shape[0]
    rows = acc_u_ref.shape[0]
    n_chunks = rows // chunk_rows

    def do_chunk(r0):
        rows_sl = pl.ds(r0, chunk_rows)
        # Channel reductions: the feature tile is touched exactly once (VPU only,
        # no MXU detour).  label is constant along C, so cosine only needs
        # s1 = sum_C f and s2 = sum_C f^2 plus per-pixel scalar math.
        f = feat_ref[0, rows_sl, :].astype(jnp.float32)          # (chunk, 128)
        s1 = f
        s2 = f * f
        for ch in range(1, num_ch):
            f = feat_ref[ch, rows_sl, :].astype(jnp.float32)
            s1 = s1 + f
            s2 = s2 + f * f

        lab = lab_ref[0, rows_sl, :].astype(jnp.float32)
        lab2 = lab * lab
        inv_lab = 1.0 - lab
        w1 = float(num_ch) * lab2                                # ||label||^2 over C
        # torch cosine_similarity (docs): w12 * rsqrt(clamp_min(w1*w2, eps^2)).
        # (Recent ATen clamps each norm separately; they only differ below eps.)
        w12_u = lab * inv_lab * s1                               # x2 = f * (1 - label)
        w2_u = inv_lab * inv_lab * s2
        cos_u = w12_u * jax.lax.rsqrt(jnp.maximum(w1 * w2_u, _EPS2))
        w12_m = lab2 * s1                                        # x2 = f * label
        w2_m = lab2 * s2
        cos_m = w12_m * jax.lax.rsqrt(jnp.maximum(w1 * w2_m, _EPS2))

        acc_u_ref[rows_sl, :] += cos_u
        acc_m_ref[rows_sl, :] += cos_m

    if n_chunks <= 8:
        for c_idx in range(n_chunks):                 # static unroll (small tiles)
            do_chunk(c_idx * chunk_rows)
    else:
        def body(i, carry):
            do_chunk(pl.multiple_of(i * chunk_rows, chunk_rows))
            return carry
        jax.lax.fori_loop(0, n_chunks, body, 0)

    @pl.when(t == pl.num_programs(1) - 1)
    def _finalize():
        # Per-batch sums, splatted to a full aligned (8,128) vreg (lane-dense store).
        out_u_ref[...] = jnp.broadcast_to(jnp.sum(acc_u_ref[...]), out_u_ref.shape)
        out_m_ref[...] = jnp.broadcast_to(jnp.sum(acc_m_ref[...]), out_m_ref.shape)


def pix_contrast(feature, label, iteration, *, dist=0.2, thresh=5,
                 max_epoch=100, cast_label=True):
    """feature: (B, C, H, W); label: (B, H, W). Scalar f32 loss == PixContrasrt.forward."""
    B, C, H, W = feature.shape
    HW = H * W
    n_valid = B * HW                                  # torch .mean() denominator

    feat = feature.reshape(B, C, HW)
    lab = label.reshape(B, 1, HW)
    # Shrink label wire traffic when the feature dtype is narrower (e.g. bf16
    # features + f32 labels).  Pass cast_label=False for bit-exact f32 labels.
    if cast_label and feat.dtype.itemsize < lab.dtype.itemsize:
        lab = lab.astype(feat.dtype)

    tile_budget, vmem_limit = _vmem_config()
    # Per-row (128 px) VMEM cost: double-buffered feature + label blocks plus
    # the two resident f32 accumulators.
    per_row_bytes = _LANE * (2 * C * feat.dtype.itemsize
                             + 2 * lab.dtype.itemsize
                             + 2 * 4)
    max_rows = max(8, tile_budget // per_row_bytes)
    nrows_min = _cdiv(HW, _LANE)
    rows, num_tiles, chunk_rows = _plan_tiles(nrows_min, max_rows)
    nrows = rows * num_tiles
    hw_pad = nrows * _LANE

    if hw_pad != HW:
        # Zero pixels contribute exactly 0 to both cosine sums (w12 == 0), so
        # right-padding the flattened spatial axis is correctness-neutral.
        feat = jnp.pad(feat, ((0, 0), (0, 0), (0, hw_pad - HW)))
        lab = jnp.pad(lab, ((0, 0), (0, 0), (0, hw_pad - HW)))
    feat = feat.reshape(B, C, nrows, _LANE)           # metadata-only reshape
    lab = lab.reshape(B, 1, nrows, _LANE)

    kernel = functools.partial(_pixcontrast_kernel, chunk_rows=chunk_rows)

    out_u, out_m = pl.pallas_call(
        kernel,
        out_shape=(jax.ShapeDtypeStruct((B, 8, _LANE), jnp.float32),
                   jax.ShapeDtypeStruct((B, 8, _LANE), jnp.float32)),
        grid_spec=pltpu.PrefetchScalarGridSpec(
            num_scalar_prefetch=0,
            grid=(B, num_tiles),
            in_specs=[
                pl.BlockSpec((None, C, rows, _LANE), lambda b, t: (b, 0, t, 0)),
                pl.BlockSpec((None, 1, rows, _LANE), lambda b, t: (b, 0, t, 0)),
            ],
            out_specs=(
                pl.BlockSpec((1, 8, _LANE), lambda b, t: (b, 0, 0)),
                pl.BlockSpec((1, 8, _LANE), lambda b, t: (b, 0, 0)),
            ),
            scratch_shapes=[
                pltpu.VMEM((rows, _LANE), jnp.float32),  # sum cos(label, unmasked)
                pltpu.VMEM((rows, _LANE), jnp.float32),  # sum cos(label, masked)
            ],
        ),
        compiler_params=pltpu.CompilerParams(
            # Batch axis is independent (per-batch outputs) -> splits across the
            # two v7x TensorCores; the tile axis is the sequential reduction.
            dimension_semantics=("parallel", "arbitrary"),
            vmem_limit_bytes=vmem_limit,
        ),
    )(feat, lab)

    # Scalar epilogue (means + loss selection) in plain JAX on tiny outputs.
    inv_n = jnp.float32(1.0 / float(n_valid))
    undist = jnp.sum(out_u[:, 0, 0]) * inv_n
    maskdist = jnp.sum(out_m[:, 0, 0]) * inv_n
    it = jnp.asarray(iteration, jnp.float32)
    m = 1.0 - it / jnp.float32(max_epoch)
    distloss = jnp.where(undist > maskdist + jnp.float32(dist),
                         1.5 * undist + 0.8 * maskdist,
                         undist + 0.5 * maskdist)
    return jnp.where(it < jnp.float32(thresh),
                     distloss,
                     (m / (1.0 - m + 1e-5)) * distloss)


def _reference_loss(feature, label, iteration, dist=0.2, thresh=5, max_epoch=100):
    """Pure-JAX reference mirroring PixContrasrt.forward (same cosine formula)."""
    feat = feature.astype(jnp.float32)
    lab = label.astype(jnp.float32)[:, None]          # (B, 1, H, W)
    C = feat.shape[1]

    def cos(x2):
        w12 = jnp.sum(lab * x2, axis=1)
        w1 = C * lab[:, 0] ** 2
        w2 = jnp.sum(x2 * x2, axis=1)
        return w12 / jnp.sqrt(jnp.maximum(w1 * w2, _EPS2))

    undist = cos(feat * (1.0 - lab)).mean()
    maskdist = cos(feat * lab).mean()
    m = 1.0 - iteration / max_epoch
    distloss = jnp.where(undist > maskdist + dist,
                         1.5 * undist + 0.8 * maskdist,
                         undist + 0.5 * maskdist)
    return jnp.where(iteration < thresh, distloss, m / (1.0 - m + 1e-5) * distloss)


if __name__ == "__main__":
    key = jax.random.PRNGKey(0)
    kf, kl = jax.random.split(key)

    B, C, H, W = 2, 4, 16, 16
    feature = jax.random.normal(kf, (B, C, H, W), dtype=jnp.float32)
    # Soft segmentation-style mask in [0, 1] (exercises both cosine branches).
    label = jax.random.uniform(kl, (B, H, W), dtype=jnp.float32)

    loss = pix_contrast(feature, label, iteration=3,
                        dist=0.2, thresh=5, max_epoch=100)
    loss = jax.block_until_ready(loss)

    ref = jax.block_until_ready(
        _reference_loss(feature, label, 3, dist=0.2, thresh=5, max_epoch=100))
    assert abs(float(loss) - float(ref)) <= 1e-3 + 1e-3 * abs(float(ref)), (loss, ref)
    print("KERNEL_OK")
</pallas_src>

<mosaic_0001>
module attributes {stable_mosaic.version = 11 : i64} {
  func.func @_pixcontrast_kernel(%arg0: i32, %arg1: i32, %arg2: memref<1x4x8x128xf32, #tpu.memory_space<vmem>>, %arg3: memref<1x1x8x128xf32, #tpu.memory_space<vmem>>, %arg4: memref<1x8x128xf32, #tpu.memory_space<vmem>>, %arg5: memref<1x8x128xf32, #tpu.memory_space<vmem>>, %arg6: memref<8x128xf32, #tpu.memory_space<vmem>>, %arg7: memref<8x128xf32, #tpu.memory_space<vmem>>) attributes {dimension_semantics = [#tpu.dimension_semantics<parallel>, #tpu.dimension_semantics<arbitrary>], iteration_bounds = array<i64: 2, 1>, scalar_prefetch = 0 : i64, scratch_operands = 2 : i64, tpu.core_type = #tpu.core_type<tc>, window_params = [{transform_indices = @transform_0, window_bounds = array<i64: 1, 4, 8, 128>}, {transform_indices = @transform_1, window_bounds = array<i64: 1, 1, 8, 128>}, {transform_indices = @transform_2, window_bounds = array<i64: 1, 8, 128>}, {transform_indices = @transform_3, window_bounds = array<i64: 1, 8, 128>}]} {
    %c0_i32 = arith.constant 0 : i32
    %0 = arith.cmpi eq, %arg1, %c0_i32 : i32
    %1 = arith.extui %0 : i1 to i32
    %c0_i32_0 = arith.constant 0 : i32
    %2 = arith.cmpi ne, %1, %c0_i32_0 : i32
    scf.if %2 {
      %cst_30 = arith.constant 0.000000e+00 : f32
      %53 = vector.broadcast %cst_30 : f32 to vector<8x128xf32>
      %c0_31 = arith.constant 0 : index
      %c0_32 = arith.constant 0 : index
      %54 = vector.load %arg6[%c0_31, %c0_32] : memref<8x128xf32, #tpu.memory_space<vmem>>, vector<8x128xf32>
      tpu.vector_store %arg6[%c0_31, %c0_32], %53 {strides = array<i32>} : memref<8x128xf32, #tpu.memory_space<vmem>>, vector<8x128xf32>,
      %cst_33 = arith.constant 0.000000e+00 : f32
      %55 = vector.broadcast %cst_33 : f32 to vector<8x128xf32>
      %c0_34 = arith.constant 0 : index
      %c0_35 = arith.constant 0 : index
      %56 = vector.load %arg7[%c0_34, %c0_35] : memref<8x128xf32, #tpu.memory_space<vmem>>, vector<8x128xf32>
      tpu.vector_store %arg7[%c0_34, %c0_35], %55 {strides = array<i32>} : memref<8x128xf32, #tpu.memory_space<vmem>>, vector<8x128xf32>,
    } else {
    }
    %c0 = arith.constant 0 : index
    %c0_1 = arith.constant 0 : index
    %c0_2 = arith.constant 0 : index
    %c0_3 = arith.constant 0 : index
    %3 = vector.load %arg2[%c0, %c0_1, %c0_2, %c0_3] : memref<1x4x8x128xf32, #tpu.memory_space<vmem>>, vector<1x1x8x128xf32>
    %4 = vector.shape_cast %3 : vector<1x1x8x128xf32> to vector<8x128xf32>
    %5 = arith.mulf %4, %4 : vector<8x128xf32>
    %c0_4 = arith.constant 0 : index
    %c1 = arith.constant 1 : index
    %c0_5 = arith.constant 0 : index
    %c0_6 = arith.constant 0 : index
    %6 = vector.load %arg2[%c0_4, %c1, %c0_5, %c0_6] : memref<1x4x8x128xf32, #tpu.memory_space<vmem>>, vector<1x1x8x128xf32>
    %7 = vector.shape_cast %6 : vector<1x1x8x128xf32> to vector<8x128xf32>
    %8 = arith.addf %4, %7 : vector<8x128xf32>
    %9 = arith.mulf %7, %7 : vector<8x128xf32>
    %10 = arith.addf %5, %9 : vector<8x128xf32>
    %c0_7 = arith.constant 0 : index
    %c2 = arith.constant 2 : index
    %c0_8 = arith.constant 0 : index
    %c0_9 = arith.constant 0 : index
    %11 = vector.load %arg2[%c0_7, %c2, %c0_8, %c0_9] : memref<1x4x8x128xf32, #tpu.memory_space<vmem>>, vector<1x1x8x128xf32>
    %12 = vector.shape_cast %11 : vector<1x1x8x128xf32> to vector<8x128xf32>
    %13 = arith.addf %8, %12 : vector<8x128xf32>
    %14 = arith.mulf %12, %12 : vector<8x128xf32>
    %15 = arith.addf %10, %14 : vector<8x128xf32>
    %c0_10 = arith.constant 0 : index
    %c3 = arith.constant 3 : index
    %c0_11 = arith.constant 0 : index
    %c0_12 = arith.constant 0 : index
    %16 = vector.load %arg2[%c0_10, %c3, %c0_11, %c0_12] : memref<1x4x8x128xf32, #tpu.memory_space<vmem>>, vector<1x1x8x128xf32>
    %17 = vector.shape_cast %16 : vector<1x1x8x128xf32> to vector<8x128xf32>
    %18 = arith.addf %13, %17 : vector<8x128xf32>
    %19 = arith.mulf %17, %17 : vector<8x128xf32>
    %20 = arith.addf %15, %19 : vector<8x128xf32>
    %c0_13 = arith.constant 0 : index
    %c0_14 = arith.constant 0 : index
    %c0_15 = arith.constant 0 : index
    %c0_16 = arith.constant 0 : index
    %21 = vector.load %arg3[%c0_13, %c0_14, %c0_15, %c0_16] : memref<1x1x8x128xf32, #tpu.memory_space<vmem>>, vector<1x1x8x128xf32>
    %22 = vector.shape_cast %21 : vector<1x1x8x128xf32> to vector<8x128xf32>
    %23 = arith.mulf %22, %22 : vector<8x128xf32>
    %cst = arith.constant 1.000000e+00 : f32
    %24 = vector.broadcast %cst : f32 to vector<8x128xf32>
    %25 = arith.subf %24, %22 : vector<8x128xf32>
    %cst_17 = arith.constant 4.000000e+00 : f32
    %26 = vector.broadcast %cst_17 : f32 to vector<8x128xf32>
    %27 = arith.mulf %26, %23 : vector<8x128xf32>
    %28 = arith.mulf %22, %25 : vector<8x128xf32>
    %29 = arith.mulf %28, %18 : vector<8x128xf32>
    %30 = arith.mulf %25, %25 : vector<8x128xf32>
    %31 = arith.mulf %30, %20 : vector<8x128xf32>
    %32 = arith.mulf %27, %31 : vector<8x128xf32>
    %cst_18 = arith.constant 1.000000e-16 : f32
    %33 = vector.broadcast %cst_18 : f32 to vector<8x128xf32>
    %34 = arith.maximumf %32, %33 : vector<8x128xf32>
    %35 = math.rsqrt %34 : vector<8x128xf32>
    %36 = arith.mulf %29, %35 : vector<8x128xf32>
    %37 = arith.mulf %23, %18 : vector<8x128xf32>
    %38 = arith.mulf %23, %20 : vector<8x128xf32>
    %39 = arith.mulf %27, %38 : vector<8x128xf32>
    %cst_19 = arith.constant 1.000000e-16 : f32
    %40 = vector.broadcast %cst_19 : f32 to vector<8x128xf32>
    %41 = arith.maximumf %39, %40 : vector<8x128xf32>
    %42 = math.rsqrt %41 : vector<8x128xf32>
    %43 = arith.mulf %37, %42 : vector<8x128xf32>
    %c0_20 = arith.constant 0 : index
    %c0_21 = arith.constant 0 : index
    %44 = vector.load %arg6[%c0_20, %c0_21] : memref<8x128xf32, #tpu.memory_space<vmem>>, vector<8x128xf32>
    %45 = arith.addf %44, %36 : vector<8x128xf32>
    %c0_22 = arith.constant 0 : index
    %c0_23 = arith.constant 0 : index
    %46 = vector.load %arg6[%c0_22, %c0_23] : memref<8x128xf32, #tpu.memory_space<vmem>>, vector<8x128xf32>
    tpu.vector_store %arg6[%c0_22, %c0_23], %45 {strides = array<i32>} : memref<8x128xf32, #tpu.memory_space<vmem>>, vector<8x128xf32>,
    %c0_24 = arith.constant 0 : index
    %c0_25 = arith.constant 0 : index
    %47 = vector.load %arg7[%c0_24, %c0_25] : memref<8x128xf32, #tpu.memory_space<vmem>>, vector<8x128xf32>
    %48 = arith.addf %47, %43 : vector<8x128xf32>
    %c0_26 = arith.constant 0 : index
    %c0_27 = arith.constant 0 : index
    %49 = vector.load %arg7[%c0_26, %c0_27] : memref<8x128xf32, #tpu.memory_space<vmem>>, vector<8x128xf32>
    tpu.vector_store %arg7[%c0_26, %c0_27], %48 {strides = array<i32>} : memref<8x128xf32, #tpu.memory_space<vmem>>, vector<8x128xf32>,
    %c0_i32_28 = arith.constant 0 : i32
    %50 = arith.cmpi eq, %arg1, %c0_i32_28 : i32
    %51 = arith.extui %50 : i1 to i32
    %c0_i32_29 = arith.constant 0 : i32
    %52 = arith.cmpi ne, %51, %c0_i32_29 : i32
    scf.if %52 {
      %c0_30 = arith.constant 0 : index
      %c0_31 = arith.constant 0 : index
      %53 = vector.load %arg6[%c0_30, %c0_31] : memref<8x128xf32, #tpu.memory_space<vmem>>, vector<8x128xf32>
      %54 = vector.shape_cast %53 : vector<8x128xf32> to vector<1x8x128xf32>
      %cst_32 = arith.constant dense<0.000000e+00> : vector<1xf32>
      %55 = vector.multi_reduction <add>, %54, %cst_32 [1, 2] : vector<1x8x128xf32> to vector<1xf32>
      %56 = vector.shape_cast %55 : vector<1xf32> to vector<1x1x1xf32>
      %57 = vector.extract %56[0, 0, 0] : f32 from vector<1x1x1xf32>
      %58 = vector.broadcast %57 : f32 to vector<1x8x128xf32>
      %c0_33 = arith.constant 0 : index
      %c0_34 = arith.constant 0 : index
      %c0_35 = arith.constant 0 : index
      %59 = vector.load %arg4[%c0_33, %c0_34, %c0_35] : memref<1x8x128xf32, #tpu.memory_space<vmem>>, vector<1x8x128xf32>
      tpu.vector_store %arg4[%c0_33, %c0_34, %c0_35], %58 {strides = array<i32>} : memref<1x8x128xf32, #tpu.memory_space<vmem>>, vector<1x8x128xf32>,
      %c0_36 = arith.constant 0 : index
      %c0_37 = arith.constant 0 : index
      %60 = vector.load %arg7[%c0_36, %c0_37] : memref<8x128xf32, #tpu.memory_space<vmem>>, vector<8x128xf32>
      %61 = vector.shape_cast %60 : vector<8x128xf32> to vector<1x8x128xf32>
      %cst_38 = arith.constant dense<0.000000e+00> : vector<1xf32>
      %62 = vector.multi_reduction <add>, %61, %cst_38 [1, 2] : vector<1x8x128xf32> to vector<1xf32>
      %63 = vector.shape_cast %62 : vector<1xf32> to vector<1x1x1xf32>
      %64 = vector.extract %63[0, 0, 0] : f32 from vector<1x1x1xf32>
      %65 = vector.broadcast %64 : f32 to vector<1x8x128xf32>
      %c0_39 = arith.constant 0 : index
      %c0_40 = arith.constant 0 : index
      %c0_41 = arith.constant 0 : index
      %66 = vector.load %arg5[%c0_39, %c0_40, %c0_41] : memref<1x8x128xf32, #tpu.memory_space<vmem>>, vector<1x8x128xf32>
      tpu.vector_store %arg5[%c0_39, %c0_40, %c0_41], %65 {strides = array<i32>} : memref<1x8x128xf32, #tpu.memory_space<vmem>>, vector<1x8x128xf32>,
    } else {
    }
    return
  }
  func.func @transform_0(%arg0: i32, %arg1: i32) -> (i32, i32, i32, i32) {
    %c0_i32 = arith.constant 0 : i32
    %c0_i32_0 = arith.constant 0 : i32
    %c0_i32_1 = arith.constant 0 : i32
    return %arg0, %c0_i32, %arg1, %c0_i32_0 : i32, i32, i32, i32
  }
  func.func @transform_1(%arg0: i32, %arg1: i32) -> (i32, i32, i32, i32) {
    %c0_i32 = arith.constant 0 : i32
    %c0_i32_0 = arith.constant 0 : i32
    %c0_i32_1 = arith.constant 0 : i32
    return %arg0, %c0_i32, %arg1, %c0_i32_0 : i32, i32, i32, i32
  }
  func.func @transform_2(%arg0: i32, %arg1: i32) -> (i32, i32, i32) {
    %c0_i32 = arith.constant 0 : i32
    %c0_i32_0 = arith.constant 0 : i32
    %c0_i32_1 = arith.constant 0 : i32
    return %arg0, %c0_i32, %c0_i32_0 : i32, i32, i32
  }
  func.func @transform_3(%arg0: i32, %arg1: i32) -> (i32, i32, i32) {
    %c0_i32 = arith.constant 0 : i32
    %c0_i32_0 = arith.constant 0 : i32
    %c0_i32_1 = arith.constant 0 : i32
    return %arg0, %c0_i32, %c0_i32_0 : i32, i32, i32
  }
}

</mosaic_0001>

<llo_original>
// kernel: tpu_custom_call.1
$region0: #{tpu_custom_call.1}
  #allocation0 [shape = 'u32[]', space=smem, size = 0x4, offset = 0x4, fixed_abs, tag = 'smem constant byte address 0x4 - core index']
  #allocation1 [shape = 'u32[144,128]{1,0:T(1,128)}', space=vmem, size = 0x12000, scoped, tag = 'internal scratch']
  #allocation2 [shape = 'f32[8,128]{1,0:T(8,128)}', space=vmem, size = 0x1000, scoped, tag = 'scratch operand']
  #allocation3 [shape = 'f32[8,128]{1,0:T(8,128)}', space=vmem, size = 0x1000, scoped, tag = 'scratch operand']
  %s0 = inlined_call_operand.hbm [shape: f32[2,4,8,128], index: 0, kind: input, shape index: {}]
  %s1 = inlined_call_operand.hbm [shape: f32[2,1,8,128], index: 1, kind: input, shape index: {}]
  %s2 = inlined_call_operand.hbm [shape: f32[2,8,128], index: 2, kind: output, shape index: {0}]
  %s3 = inlined_call_operand.hbm [shape: f32[2,8,128], index: 3, kind: output, shape index: {1}]
  %4 = xla_tuple %s2, %s3
  %s5 = sld [smem:[#allocation0]]
  $region65: #{tpu_custom_call.1} parent=0
    _
  %s7 = ssub.s32 1, %s5
  %s8 = scalar_select 0, %s7, %s5
  $region1: #{tpu_custom_call.1} parent=0
    #allocation4 [shape = 'u8[32768]{0}', space=vmem, size = 0x8000, scoped, tag = 'input window, operand 0']
    #allocation5 [shape = 's32[2]{0}', space=sflag, size = 0x8, scoped, tag = 'scoped memory for tpu_custom_call.1']
    #allocation6 [shape = 's32[2]{0}', space=sflag, size = 0x8, scoped, tag = 'scoped memory for tpu_custom_call.1']
    #allocation7 [shape = 'u8[8192]{0}', space=vmem, size = 0x2000, scoped, tag = 'input window, operand 1']
    #allocation8 [shape = 's32[2]{0}', space=sflag, size = 0x8, scoped, tag = 'scoped memory for tpu_custom_call.1']
    #allocation9 [shape = 'u8[8192]{0}', space=vmem, size = 0x2000, scoped, tag = 'output window, operand 0']
    #allocation10 [shape = 'u8[8192]{0}', space=vmem, size = 0x2000, scoped, tag = 'output window, operand 1']
    #allocation11 [shape = 's32[2]{0}', space=sflag, size = 0x8, scoped, tag = 'scoped memory for tpu_custom_call.1']
    %9 = vsyncpa [#allocation5], 0
    %s10 = scalar_lea.sflag [#allocation5], 1
    %11 = vsyncpa %s10, 0
    %12 = vsyncpa [#allocation8], 0
    %s13 = scalar_lea.sflag [#allocation8], 1
    %14 = vsyncpa %s13, 0
    %15 = vsyncpa [#allocation6], 0
    %s16 = scalar_lea.sflag [#allocation6], 1
    %17 = vsyncpa %s16, 0
    %18 = vsyncpa [#allocation11], 0
    %s19 = scalar_lea.sflag [#allocation11], 1
    %20 = vsyncpa %s19, 0
    loop: start=0, step=1, limit=4
    $region2: #{tpu_custom_call.1} parent=1 // loop_pre_header
      _
    $region3: #{tpu_custom_call.1} parent=1 // loop_header
      %s22 = sphi 0, %s26
      %p23 = scmp.ge.s32.totalorder %s22, 4
      %s29 = sphi 0, %s41
      %s30 = sphi 0, %s37
      %s31 = sphi 0, %s29
      %s32 = sphi 0, %s30
      %s33 = sphi 0, %s31
      %s34 = sphi 0, %s32
      %s46 = sphi 0, %s48
      %s49 = sphi 0, %s46
      %s50 = sphi 0, %s49
      %s66 = sphi 0, %s50
      %s74 = sphi 0, %s76
      %s77 = sphi 0, %s74
      %s78 = sphi 0, %s77
      %s94 = sphi 0, %s78
      %s100 = sphi 0, %s102
      %s103 = sphi 0, %s100
      %s104 = sphi 0, %s103
      %s120 = sphi 0, %s104
      %s126 = sphi 0, %s128
      %s129 = sphi 0, %s126
      %s130 = sphi 0, %s129
      %s146 = sphi 0, %s130
    $region4: #{tpu_custom_call.1} parent=1 // loop_header_branch
      %25 = sbr.rel (%p23) target = $region8
    $region5: #{tpu_custom_call.1} parent=1 // loop_body
      %s27 = ssub.s32 %s22, 1
      %s28 = ssub.s32 %s22, 2
      %s35 = sadd.s32 1, %s30
      %p36 = scmp.ge.s32.totalorder %s35, 1
      %s37 = scalar_select %p36, 0, %s35
      %s38 = sadd.s32 1, %s29
      %s39 = scalar_select %p36, %s38, %s29
      %p40 = scmp.ge.s32.totalorder %s39, 2
      %s41 = scalar_select %p40, 0, %s39
      %s42 = ssub.s32 %s29, %s41
      %s43 = ssub.s32 %s30, %s37
      %s44 = sor.u32 %s42, %s43
      %p45 = scmp.eq.s32.totalorder %s44, 0
      %s47 = sadd.s32 %s46, 1
      %s48 = scalar_select %p45, %s46, %s47
      %p51 = pneg %p45
      %p52 = scmp.eq.s32.totalorder %s22, 1
      %p53 = por %p51, %p52
      %p54 = scmp.ne.s32.totalorder %s46, %s49
      %p55 = scmp.eq.s32.totalorder %s22, 0
      %p56 = por %p54, %p55
      %p57 = scmp.ne.s32.totalorder %s46, %s49
      %p58 = scmp.eq.s32.totalorder %s27, 1
      %p59 = por %p57, %p58
      %p60 = scmp.ne.s32.totalorder %s49, %s50
      %p61 = scmp.eq.s32.totalorder %s27, 0
      %p62 = por %p60, %p61
      %p63 = scmp.ne.s32.totalorder %s49, %s50
      %p64 = scmp.eq.s32.totalorder %s28, 1
      %p65 = por %p63, %p64
      %p67 = scmp.ne.s32.totalorder %s50, %s66
      %p68 = scmp.eq.s32.totalorder %s28, 0
      %p69 = por %p67, %p68
      %s70 = ssub.s32 %s29, %s41
      %s71 = ssub.s32 %s30, %s37
      %s72 = sor.u32 %s70, %s71
      %p73 = scmp.eq.s32.totalorder %s72, 0
      %s75 = sadd.s32 %s74, 1
      %s76 = scalar_select %p73, %s74, %s75
      %p79 = pneg %p73
      %p80 = scmp.eq.s32.totalorder %s22, 1
      %p81 = por %p79, %p80
      %p82 = scmp.ne.s32.totalorder %s74, %s77
      %p83 = scmp.eq.s32.totalorder %s22, 0
      %p84 = por %p82, %p83
      %p85 = scmp.ne.s32.totalorder %s74, %s77
      %p86 = scmp.eq.s32.totalorder %s27, 1
      %p87 = por %p85, %p86
      %p88 = scmp.ne.s32.totalorder %s77, %s78
      %p89 = scmp.eq.s32.totalorder %s27, 0
      %p90 = por %p88, %p89
      %p91 = scmp.ne.s32.totalorder %s77, %s78
      %p92 = scmp.eq.s32.totalorder %s28, 1
      %p93 = por %p91, %p92
      %p95 = scmp.ne.s32.totalorder %s78, %s94
      %p96 = scmp.eq.s32.totalorder %s28, 0
      %p97 = por %p95, %p96
      %s98 = ssub.s32 %s29, %s41
      %p99 = scmp.eq.s32.totalorder %s98, 0
      %s101 = sadd.s32 %s100, 1
      %s102 = scalar_select %p99, %s100, %s101
      %p105 = pneg %p99
      %p106 = scmp.eq.s32.totalorder %s22, 1
      %p107 = por %p105, %p106
      %p108 = scmp.ne.s32.totalorder %s100, %s103
      %p109 = scmp.eq.s32.totalorder %s22, 0
      %p110 = por %p108, %p109
      %p111 = scmp.ne.s32.totalorder %s100, %s103
      %p112 = scmp.eq.s32.totalorder %s27, 1
      %p113 = por %p111, %p112
      %p114 = scmp.ne.s32.totalorder %s103, %s104
      %p115 = scmp.eq.s32.totalorder %s27, 0
      %p116 = por %p114, %p115
      %p117 = scmp.ne.s32.totalorder %s103, %s104
      %p118 = scmp.eq.s32.totalorder %s28, 1
      %p119 = por %p117, %p118
      %p121 = scmp.ne.s32.totalorder %s104, %s120
      %p122 = scmp.eq.s32.totalorder %s28, 0
      %p123 = por %p121, %p122
      %s124 = ssub.s32 %s29, %s41
      %p125 = scmp.eq.s32.totalorder %s124, 0
      %s127 = sadd.s32 %s126, 1
      %s128 = scalar_select %p125, %s126, %s127
      %p131 = pneg %p125
      %p132 = scmp.eq.s32.totalorder %s22, 1
      %p133 = por %p131, %p132
      %p134 = scmp.ne.s32.totalorder %s126, %s129
      %p135 = scmp.eq.s32.totalorder %s22, 0
      %p136 = por %p134, %p135
      %p137 = scmp.ne.s32.totalorder %s126, %s129
      %p138 = scmp.eq.s32.totalorder %s27, 1
      %p139 = por %p137, %p138
      %p140 = scmp.ne.s32.totalorder %s129, %s130
      %p141 = scmp.eq.s32.totalorder %s27, 0
      %p142 = por %p140, %p141
      %p143 = scmp.ne.s32.totalorder %s129, %s130
      %p144 = scmp.eq.s32.totalorder %s28, 1
      %p145 = por %p143, %p144
      %p147 = scmp.ne.s32.totalorder %s130, %s146
      %p148 = scmp.eq.s32.totalorder %s28, 0
      %p149 = por %p147, %p148
      %p150 = scmp.le.s32.totalorder 1, %s22
      %p151 = scmp.lt.s32.totalorder %s22, 3
      %p152 = pnand %p150, %p151
      %p153 = pneg %p152
      // Predicated region
      $region9: #{tpu_custom_call.1} parent=5 // pred_check
        _
      $region10: #{tpu_custom_call.1} parent=5 // pred_check_branch
        %155 = sbr.rel (%p152) target = $region12
      $region11: #{tpu_custom_call.1} parent=5 // pred_region
        %s156 = ssub.s32 %s22, 1
      $region12: #{tpu_custom_call.1} parent=5 // pred_fallthru
        _
      %p157 = scmp.lt.s32.totalorder %s22, 2
      // Predicated region
      $region13: #{tpu_custom_call.1} parent=5 // pred_check
        %p158 = pneg %p157
      $region14: #{tpu_custom_call.1} parent=5 // pred_check_branch
        %160 = sbr.rel (%p158) target = $region16
      $region15: #{tpu_custom_call.1} parent=5 // pred_region
        // Predicated region
        $region17: #{tpu_custom_call.1} parent=15 // pred_check
          %p161 = pneg %p56
        $region18: #{tpu_custom_call.1} parent=15 // pred_check_branch
          %163 = sbr.rel (%p161) target = $region20
        $region19: #{tpu_custom_call.1} parent=15 // pred_region
          %s164 = sand.u32 %s46, 1
          %s165 = scalar_lea.sflag [#allocation5], %s164
          %s166 = sand.u32 %s46, 1
          %s167 = smul.addr %s166, 32
          %s168 = scalar_lea.vmem [#allocation4], %s167
          %s170 = ssub.s32 512, 512
          %171 = vsyncadd %s165, %s170
          %s172 = smul.addr %s29, 4
          %s173 = sadd.s32 %s30, %s172
          %s174 = smul.addr %s173, 128
          %s175 = scalar_lea.hbm %s0, %s174
          %s176 = sshll.u32 %s168, 4
          %s177 = int_to_ptr.vmem [resolvable:$true] %s176
          %182 = dma.hbm_to_vmem [thread:$0]  %s175, 512, %s177, %s165, 128, 128, 8
        $region20: #{tpu_custom_call.1} parent=15 // pred_fallthru
          _
        // Predicated region
        $region21: #{tpu_custom_call.1} parent=15 // pred_check
          %p183 = pneg %p84
        $region22: #{tpu_custom_call.1} parent=15 // pred_check_branch
          %185 = sbr.rel (%p183) target = $region24
        $region23: #{tpu_custom_call.1} parent=15 // pred_region
          %s186 = sand.u32 %s74, 1
          %s187 = scalar_lea.sflag [#allocation8], %s186
          %s188 = sand.u32 %s74, 1
          %s189 = smul.addr %s188, 8
          %s190 = scalar_lea.vmem [#allocation7], %s189
          %s192 = ssub.s32 128, 128
          %193 = vsyncadd %s187, %s192
          %s194 = sadd.s32 %s30, %s29
          %s195 = smul.addr %s194, 128
          %s196 = scalar_lea.hbm %s1, %s195
          %s198 = sshll.u32 %s190, 4
          %s199 = int_to_ptr.vmem [resolvable:$true] %s198
          %201 = dma.hbm_to_vmem [thread:$0]  %s196, 128, %s199, %s187
        $region24: #{tpu_custom_call.1} parent=15 // pred_fallthru
          _
      $region16: #{tpu_custom_call.1} parent=5 // pred_fallthru
        _
      %p202 = scmp.le.s32.totalorder 1, %s22
      %p203 = scmp.lt.s32.totalorder %s22, 3
      %p204 = pnand %p202, %p203
      %p205 = pneg %p204
      // Predicated region
      $region25: #{tpu_custom_call.1} parent=5 // pred_check
        _
      $region26: #{tpu_custom_call.1} parent=5 // pred_check_branch
        %207 = sbr.rel (%p204) target = $region28
      $region27: #{tpu_custom_call.1} parent=5 // pred_region
        %s208 = ssub.s32 %s22, 1
        %s209 = sand.u32 %s49, 1
        %s210 = scalar_lea.sflag [#allocation5], %s209
        %s211 = sand.u32 %s49, 1
        %s212 = smul.addr %s211, 32
        %s213 = scalar_lea.vmem [#allocation4], %s212
        // Predicated region
        $region29: #{tpu_custom_call.1} parent=27 // pred_check
          %p214 = pneg %p62
        $region30: #{tpu_custom_call.1} parent=27 // pred_check_branch
          %216 = sbr.rel (%p214) target = $region32
        $region31: #{tpu_custom_call.1} parent=27 // pred_region
          %217 = dma.done %s210, 512
        $region32: #{tpu_custom_call.1} parent=27 // pred_fallthru
          _
        %s218 = sand.u32 %s77, 1
        %s219 = scalar_lea.sflag [#allocation8], %s218
        %s220 = sand.u32 %s77, 1
        %s221 = smul.addr %s220, 8
        %s222 = scalar_lea.vmem [#allocation7], %s221
        // Predicated region
        $region33: #{tpu_custom_call.1} parent=27 // pred_check
          %p223 = pneg %p90
        $region34: #{tpu_custom_call.1} parent=27 // pred_check_branch
          %225 = sbr.rel (%p223) target = $region36
        $region35: #{tpu_custom_call.1} parent=27 // pred_region
          %226 = dma.done %s219, 128
        $region36: #{tpu_custom_call.1} parent=27 // pred_fallthru
          _
        %s227 = sand.u32 %s49, 1
        %s228 = scalar_lea.sflag [#allocation5], %s227
        %s229 = sand.u32 %s49, 1
        %s230 = smul.addr %s229, 32
        %s231 = scalar_lea.vmem [#allocation4], %s230
        %p232 = pneg %p62
        %p233 = pneg %p59
        %s234 = sand.u32 %s77, 1
        %s235 = scalar_lea.sflag [#allocation8], %s234
        %s236 = sand.u32 %s77, 1
        %s237 = smul.addr %s236, 8
        %s238 = scalar_lea.vmem [#allocation7], %s237
        %p239 = pneg %p90
        %p240 = pneg %p87
        %p241 = pneg %p116
        %p242 = pneg %p113
        %s243 = sand.u32 %s103, 1
        %s244 = scalar_lea.sflag [#allocation6], %s243
        %s245 = sand.u32 %s103, 1
        %s246 = smul.addr %s245, 8
        %s247 = scalar_lea.vmem [#allocation9], %s246
        %p248 = pneg %p142
        %p249 = pneg %p139
        %s250 = sand.u32 %s129, 1
        %s251 = scalar_lea.sflag [#allocation11], %s250
        %s252 = sand.u32 %s129, 1
        %s253 = smul.addr %s252, 8
        %s254 = scalar_lea.vmem [#allocation10], %s253
        %p255 = scmp.eq.s32.totalorder %s32, 0
        // Predicated region
        $region37: #{tpu_custom_call.1} parent=27 // pred_check
          %p256 = pneg %p255
        $region38: #{tpu_custom_call.1} parent=27 // pred_check_branch
          %258 = sbr.rel (%p256) target = $region40
        $region39: #{tpu_custom_call.1} parent=27 // pred_region
          %259 = vst [vmem:[#allocation2] sm:$0xff] 0.0
          %260 = vst [vmem:[#allocation3] sm:$0xff] 0.0
        $region40: #{tpu_custom_call.1} parent=27 // pred_fallthru
          _
        %v261 = vld [vmem:[%s213] sm:$0xff]
        %v262 = vmul.f32 %v261, %v261
        %s263 = scalar_lea.vmem %s213, 8 [#allocation4]
        %v264 = vld [vmem:[%s263] sm:$0xff]
        %v265 = vadd.f32 %v261, %v264
        %v266 = vmul.f32 %v264, %v264
        %v267 = vadd.f32 %v262, %v266
        %s268 = scalar_lea.vmem %s213, 16 [#allocation4]
        %v269 = vld [vmem:[%s268] sm:$0xff]
        %v270 = vadd.f32 %v265, %v269
        %v271 = vmul.f32 %v269, %v269
        %v272 = vadd.f32 %v267, %v271
        %s273 = scalar_lea.vmem %s213, 24 [#allocation4]
        %v274 = vld [vmem:[%s273] sm:$0xff]
        %v275 = vadd.f32 %v270, %v274
        %v276 = vmul.f32 %v274, %v274
        %v277 = vadd.f32 %v272, %v276
        %v278 = vld [vmem:[%s222] sm:$0xff]
        %v279 = vmul.f32 %v278, %v278
        %v280 = vsub.f32 1.0, %v278
        %v281 = vmul.f32 %v279, 4.0
        %v282 = vmul.f32 %v278, %v280
        %v283 = vmul.f32 %v282, %v275
        %v284 = vmul.f32 %v280, %v280
        %v285 = vmul.f32 %v284, %v277
        %v286 = vmul.f32 %v281, %v285
        %v287 = vmax.f32 %v286, 1e-16
        %v288 = vrsqrt.pop %v287
        %v289 = vmul.f32 %v283, %v288
        %v290 = vmul.f32 %v279, %v275
        %v291 = vmul.f32 %v279, %v277
        %v292 = vmul.f32 %v281, %v291
        %v293 = vmax.f32 %v292, 1e-16
        %v294 = vrsqrt.pop %v293
        %v295 = vmul.f32 %v290, %v294
        %v296 = vld [vmem:[#allocation2] sm:$0xff]
        %v297 = vadd.f32 %v296, %v289
        %298 = vst [vmem:[#allocation2] sm:$0xff] %v297
        %v299 = vld [vmem:[#allocation3] sm:$0xff]
        %v300 = vadd.f32 %v299, %v295
        %301 = vst [vmem:[#allocation3] sm:$0xff] %v300
        // Predicated region
        $region41: #{tpu_custom_call.1} parent=27 // pred_check
          %p302 = pneg %p255
        $region42: #{tpu_custom_call.1} parent=27 // pred_check_branch
          %304 = sbr.rel (%p302) target = $region44
        $region43: #{tpu_custom_call.1} parent=27 // pred_region
          %v305 = vld [vmem:[#allocation2] sm:$0xff]
          %306 = vadd.xlane.f32.xlu0 %v305
          %v307 = vpop.xlane.xlu0 %306
          %v308 = vrot.slane %v307, 4
          %v309 = vadd.f32 %v307, %v308
          %v310 = vrot.slane %v309, 2
          %v311 = vadd.f32 %v309, %v310
          %v312 = vrot.slane %v311, 1
          %v313 = vadd.f32 %v311, %v312
          %s314 = vtos %v313
          %v315 = vstv %s314
          %316 = vst [vmem:[%s247] sm:$0xff] %v315
          %v317 = vld [vmem:[#allocation3] sm:$0xff]
          %318 = vadd.xlane.f32.xlu0 %v317
          %v319 = vpop.xlane.xlu0 %318
          %v320 = vrot.slane %v319, 4
          %v321 = vadd.f32 %v319, %v320
          %v322 = vrot.slane %v321, 2
          %v323 = vadd.f32 %v321, %v322
          %v324 = vrot.slane %v323, 1
          %v325 = vadd.f32 %v323, %v324
          %s326 = vtos %v325
          %v327 = vstv %s326
          %328 = vst [vmem:[%s254] sm:$0xff] %v327
        $region44: #{tpu_custom_call.1} parent=27 // pred_fallthru
          _
        %s329 = sand.u32 %s103, 1
        %s330 = scalar_lea.sflag [#allocation6], %s329
        %s331 = sand.u32 %s103, 1
        %s332 = smul.addr %s331, 8
        %s333 = scalar_lea.vmem [#allocation9], %s332
        %s334 = sand.u32 %s129, 1
        %s335 = scalar_lea.sflag [#allocation11], %s334
        %s336 = sand.u32 %s129, 1
        %s337 = smul.addr %s336, 8
        %s338 = scalar_lea.vmem [#allocation10], %s337
        // Predicated region
        $region45: #{tpu_custom_call.1} parent=27 // pred_check
          %p339 = pneg %p113
        $region46: #{tpu_custom_call.1} parent=27 // pred_check_branch
          %341 = sbr.rel (%p339) target = $region48
        $region47: #{tpu_custom_call.1} parent=27 // pred_region
          %s343 = ssub.s32 128, 128
          %344 = vsyncadd %s330, %s343
          %s345 = smul.addr %s31, 128
          %s346 = scalar_lea.hbm %s2, %s345
          %s348 = sshll.u32 %s333, 4
          %s349 = int_to_ptr.vmem [resolvable:$true] %s348
          %351 = dma.vmem_to_hbm [thread:$0]  %s349, 128, %s346, %s330
        $region48: #{tpu_custom_call.1} parent=27 // pred_fallthru
          _
        // Predicated region
        $region49: #{tpu_custom_call.1} parent=27 // pred_check
          %p352 = pneg %p139
        $region50: #{tpu_custom_call.1} parent=27 // pred_check_branch
          %354 = sbr.rel (%p352) target = $region52
        $region51: #{tpu_custom_call.1} parent=27 // pred_region
          %s356 = ssub.s32 128, 128
          %357 = vsyncadd %s335, %s356
          %s358 = smul.addr %s31, 128
          %s359 = scalar_lea.hbm %s3, %s358
          %s361 = sshll.u32 %s338, 4
          %s362 = int_to_ptr.vmem [resolvable:$true] %s361
          %364 = dma.vmem_to_hbm [thread:$0]  %s362, 128, %s359, %s335
        $region52: #{tpu_custom_call.1} parent=27 // pred_fallthru
          _
      $region28: #{tpu_custom_call.1} parent=5 // pred_fallthru
        _
      %p365 = scmp.le.s32.totalorder 2, %s22
      // Predicated region
      $region53: #{tpu_custom_call.1} parent=5 // pred_check
        %p366 = pneg %p365
      $region54: #{tpu_custom_call.1} parent=5 // pred_check_branch
        %368 = sbr.rel (%p366) target = $region56
      $region55: #{tpu_custom_call.1} parent=5 // pred_region
        %s369 = ssub.s32 %s22, 2
        // Predicated region
        $region57: #{tpu_custom_call.1} parent=55 // pred_check
          %p370 = pneg %p119
        $region58: #{tpu_custom_call.1} parent=55 // pred_check_branch
          %372 = sbr.rel (%p370) target = $region60
        $region59: #{tpu_custom_call.1} parent=55 // pred_region
          %s373 = sand.u32 %s104, 1
          %s374 = scalar_lea.sflag [#allocation6], %s373
          %s375 = sand.u32 %s104, 1
          %s376 = smul.addr %s375, 8
          %s377 = scalar_lea.vmem [#allocation9], %s376
          %378 = dma.done %s374, 128
        $region60: #{tpu_custom_call.1} parent=55 // pred_fallthru
          _
        // Predicated region
        $region61: #{tpu_custom_call.1} parent=55 // pred_check
          %p379 = pneg %p145
        $region62: #{tpu_custom_call.1} parent=55 // pred_check_branch
          %381 = sbr.rel (%p379) target = $region64
        $region63: #{tpu_custom_call.1} parent=55 // pred_region
          %s382 = sand.u32 %s130, 1
          %s383 = scalar_lea.sflag [#allocation11], %s382
          %s384 = sand.u32 %s130, 1
          %s385 = smul.addr %s384, 8
          %s386 = scalar_lea.vmem [#allocation10], %s385
          %387 = dma.done %s383, 128
        $region64: #{tpu_custom_call.1} parent=55 // pred_fallthru
          _
      $region56: #{tpu_custom_call.1} parent=5 // pred_fallthru
        _
    $region6: #{tpu_custom_call.1} parent=1 // loop_footer
      %s26 = sadd.s32 1, %s22
    $region7: #{tpu_custom_call.1} parent=1 // loop_footer_branch
      %21 = sbr.rel target = $region3
    $region8: #{tpu_custom_call.1} parent=1 // loop_exit
      _
    %388 = vsyncpa [#allocation5], 1
    %s389 = scalar_lea.sflag [#allocation5], 1
    %390 = vsyncpa %s389, 1
    %391 = vsyncpa [#allocation8], 1
    %s392 = scalar_lea.sflag [#allocation8], 1
    %393 = vsyncpa %s392, 1
    %394 = vsyncpa [#allocation6], 1
    %s395 = scalar_lea.sflag [#allocation6], 1
    %396 = vsyncpa %s395, 1
    %397 = vsyncpa [#allocation11], 1
    %s398 = scalar_lea.sflag [#allocation11], 1
    %399 = vsyncpa %s398, 1

</llo_original>
